<compile_context>
chip_gen: v7x
topology: tpu7x:2x2x1
jax: 0.10.0
libtpu: 0.0.40
codegen_flags: <defaults>
</compile_context>

<pallas_src>
import jax
import jax.numpy as jnp
from jax import lax
from jax.experimental import pallas as pl
from jax.experimental.pallas import tpu as pltpu


def _memory_attention_kernel(qs_ref, mem_ref, out_ref):
    qs = qs_ref[...]       # (L, Cp)  bf16  (batch dim squeezed by BlockSpec)
    mem = mem_ref[...]     # (tm, Cp) bf16

    # s[b] = (qs @ memory.T).permute(0,2,1)[b] == memory_tile @ qs.T -> (tm, L)
    # Contract over C directly (minor dim of both operands): no .T, no XLU transpose.
    s = lax.dot_general(
        mem, qs,
        dimension_numbers=(((1,), (1,)), ((), ())),
        preferred_element_type=jnp.float32,
    )

    # Numerically stable softmax pieces in f32 on the VPU/EUP; the 1/denom scaling is
    # deferred to the (tm, Cp) result of the second matmul (tm*Cp << tm*L multiplies).
    s_max = jnp.max(s, axis=-1, keepdims=True)
    p = jnp.exp(s - s_max)                        # un-normalized probs, values in [0, 1]
    denom = jnp.sum(p, axis=-1, keepdims=True)    # (tm, 1)

    # r_unnorm = p @ qs -> (tm, Cp); bf16 operands, f32 accumulation on the MXU.
    r = lax.dot_general(
        p.astype(jnp.bfloat16), qs,
        dimension_numbers=(((1,), (0,)), ((), ())),
        preferred_element_type=jnp.float32,
    )
    r = r * pl.reciprocal(denom, approx=True)     # EUP reciprocal + (tm, Cp) VPU multiply
    out_ref[...] = r.astype(out_ref.dtype)


def _pick_m_tile(M, L):
    # Small memory banks (typical MEMTO): one full-M block, grid = (B,).
    if M <= 512:
        return M
    # v6e/v7x MXU is 2x256x256 -> prefer 256/512-aligned tiles; for very long L prefer
    # a smaller tile to keep the (tm, L) f32 score intermediate out of spill territory
    # (v5e has only one vector-store slot).
    prefs = (256, 128, 512) if L >= 4096 else (512, 256, 128)
    for t in prefs:
        if M % t == 0:
            return t
    return 256  # cdiv grid handles the ragged boundary (rows are independent)


def memory_attention(qs, memory):
    """qs: (B, L, C) f32, memory: (M, C) f32 -> (r: (B, M, C) f32, memory)."""
    B, L, C = qs.shape
    M, Cm = memory.shape
    assert C == Cm, "hidden dims of qs and memory must match"

    out_dtype = qs.dtype
    out_itemsize = jnp.dtype(out_dtype).itemsize

    # bf16 MXU operands produced in the wrapper (one cast, half the DMA bytes).
    qs_bf = qs.astype(jnp.bfloat16)
    mem_bf = memory.astype(jnp.bfloat16)

    # Lane-dense last dim: pad C to a multiple of 128 (exact: zero-padded contraction
    # columns add 0; padded output columns are sliced off below).
    Cp = C if C % 128 == 0 else ((C + 127) // 128) * 128
    if Cp != C:
        qs_bf = jnp.pad(qs_bf, ((0, 0), (0, 0), (0, Cp - C)))
        mem_bf = jnp.pad(mem_bf, ((0, 0), (0, Cp - C)))

    tm = _pick_m_tile(M, L)
    nm = pl.cdiv(M, tm)

    # ---- VMEM budget (bf16 inputs, f32 score/prob intermediates), generation aware ----
    qs_blk = 2 * L * Cp * 2            # double-buffered bf16 qs block
    mem_blk = 2 * tm * Cp * 2          # double-buffered bf16 memory tile
    out_blk = 2 * tm * Cp * out_itemsize
    interm = 2 * tm * L * 4            # s and p (compiler-managed f32)
    est = qs_blk + mem_blk + out_blk + interm + (4 << 20)

    try:
        phys = int(getattr(pltpu.get_tpu_info(), "vmem_capacity_bytes", 128 << 20))
    except Exception:
        phys = 128 << 20
    # Never request the full physical VMEM (headroom for compiler/internal scratch):
    # v7x (64 MiB) -> ~52 MiB cap; v5e/v6e (128 MiB) -> up to ~100 MiB.
    cap = max(min(phys - (12 << 20), 100 << 20), 16 << 20)
    vmem_limit = int(min(max(est, 16 << 20), cap))

    cost = pl.CostEstimate(
        flops=4 * B * M * L * Cp,                 # two matmuls, 2 flops/MAC each
        transcendentals=B * M * L,                # exp
        bytes_accessed=(2 * B * L * Cp            # qs read once per batch (bf16)
                        + 2 * B * M * Cp          # memory tiles re-read per batch (bf16)
                        + out_itemsize * B * M * Cp),
    )

    if nm == 1:
        grid = (B,)
        in_specs = [
            pl.BlockSpec((None, L, Cp), lambda b: (b, 0, 0)),
            pl.BlockSpec((M, Cp), lambda b: (0, 0)),
        ]
        out_specs = pl.BlockSpec((None, M, Cp), lambda b: (b, 0, 0))
        dims = ("parallel",)
    else:
        grid = (B, nm)
        in_specs = [
            pl.BlockSpec((None, L, Cp), lambda b, m: (b, 0, 0)),
            pl.BlockSpec((tm, Cp), lambda b, m: (m, 0)),
        ]
        out_specs = pl.BlockSpec((None, tm, Cp), lambda b, m: (b, m, 0))
        dims = ("parallel", "parallel")

    r = pl.pallas_call(
        _memory_attention_kernel,
        out_shape=jax.ShapeDtypeStruct((B, M, Cp), out_dtype),
        grid_spec=pltpu.PrefetchScalarGridSpec(
            num_scalar_prefetch=0,
            grid=grid,
            in_specs=in_specs,
            out_specs=out_specs,
        ),
        compiler_params=pltpu.CompilerParams(
            dimension_semantics=dims,
            vmem_limit_bytes=vmem_limit,
        ),
        cost_estimate=cost,
    )(qs_bf, mem_bf)

    if Cp != C:
        r = r[..., :C]
    return r, memory


def _reference(qs, memory):
    s = jnp.einsum("blc,mc->blm", qs, memory)       # qs @ memory.T
    s = jnp.transpose(s, (0, 2, 1))                 # (B, M, L)
    v = jax.nn.softmax(s, axis=2)
    r = jnp.einsum("bml,blc->bmc", v, qs)           # v @ qs
    return r


if __name__ == "__main__":
    key = jax.random.PRNGKey(0)
    k_qs, k_mem = jax.random.split(key)

    B, L, C, M = 2, 8, 32, 16
    qs = jax.random.normal(k_qs, (B, L, C), dtype=jnp.float32)
    memory = jax.random.normal(k_mem, (M, C), dtype=jnp.float32)

    r, mem_out = memory_attention(qs, memory)
    r = jax.block_until_ready(r)

    r_ref = _reference(qs, memory)
    assert r.shape == (B, M, C)
    # bf16 MXU operands + approx reciprocal -> tolerance loosened vs the pure-f32 reference.
    assert jnp.allclose(r, r_ref, atol=5e-2, rtol=5e-2), float(
        jnp.max(jnp.abs(r - r_ref))
    )
    assert jnp.array_equal(mem_out, memory)

    print("KERNEL_OK")
</pallas_src>

<mosaic_0001>
module attributes {stable_mosaic.version = 11 : i64} {
  func.func @_memory_attention_kernel(%arg0: i32, %arg1: memref<1x8x128xbf16, #tpu.memory_space<vmem>>, %arg2: memref<16x128xbf16, #tpu.memory_space<vmem>>, %arg3: memref<1x16x128xf32, #tpu.memory_space<vmem>>) attributes {dimension_semantics = [#tpu.dimension_semantics<parallel>], iteration_bounds = array<i64: 2>, scalar_prefetch = 0 : i64, scratch_operands = 0 : i64, tpu.core_type = #tpu.core_type<tc>, window_params = [{transform_indices = @transform_0, window_bounds = array<i64: 1, 8, 128>}, {pipeline_mode = #tpu.pipeline_mode<synchronous>, transform_indices = @transform_1, window_bounds = array<i64: 16, 128>}, {transform_indices = @transform_2, window_bounds = array<i64: 1, 16, 128>}]} {
    %c0 = arith.constant 0 : index
    %c0_0 = arith.constant 0 : index
    %c0_1 = arith.constant 0 : index
    %0 = vector.load %arg1[%c0, %c0_0, %c0_1] : memref<1x8x128xbf16, #tpu.memory_space<vmem>>, vector<1x8x128xbf16>
    %1 = vector.shape_cast %0 : vector<1x8x128xbf16> to vector<8x128xbf16>
    %c0_2 = arith.constant 0 : index
    %c0_3 = arith.constant 0 : index
    %2 = vector.load %arg2[%c0_2, %c0_3] : memref<16x128xbf16, #tpu.memory_space<vmem>>, vector<16x128xbf16>
    %cst = arith.constant dense<0.000000e+00> : vector<16x8xf32>
    %3 = tpu.matmul %2, %1, %cst {dimension_numbers = #tpu.dot_dimension_numbers<[1], [1], [0], [0], [0, 0, 1, 0], [], []>} : vector<16x128xbf16>, vector<8x128xbf16>, vector<16x8xf32> -> vector<16x8xf32>
    %cst_4 = arith.constant dense<0xFF800000> : vector<16xf32>
    %4 = vector.multi_reduction <maximumf>, %3, %cst_4 [1] : vector<16x8xf32> to vector<16xf32>
    %5 = vector.shape_cast %4 : vector<16xf32> to vector<16x1xf32>
    %6 = vector.broadcast %5 : vector<16x1xf32> to vector<16x8xf32>
    %7 = arith.subf %3, %6 : vector<16x8xf32>
    %8 = math.exp %7 : vector<16x8xf32>
    %cst_5 = arith.constant dense<0.000000e+00> : vector<16xf32>
    %9 = vector.multi_reduction <add>, %8, %cst_5 [1] : vector<16x8xf32> to vector<16xf32>
    %10 = vector.shape_cast %9 : vector<16xf32> to vector<16x1xf32>
    %11 = arith.truncf %8 : vector<16x8xf32> to vector<16x8xbf16>
    %cst_6 = arith.constant dense<0.000000e+00> : vector<16x128xf32>
    %12 = tpu.matmul %11, %1, %cst_6 {dimension_numbers = #tpu.dot_dimension_numbers<[1], [0], [0], [1], [0, 0, 1, 1], [], []>} : vector<16x8xbf16>, vector<8x128xbf16>, vector<16x128xf32> -> vector<16x128xf32>
    %13 = tpu.reciprocal %10 {approx = true} : vector<16x1xf32> -> vector<16x1xf32>
    %14 = vector.broadcast %13 : vector<16x1xf32> to vector<16x128xf32>
    %15 = arith.mulf %12, %14 : vector<16x128xf32>
    %c0_7 = arith.constant 0 : index
    %c0_8 = arith.constant 0 : index
    %c0_9 = arith.constant 0 : index
    %16 = vector.load %arg3[%c0_7, %c0_8, %c0_9] : memref<1x16x128xf32, #tpu.memory_space<vmem>>, vector<1x16x128xf32>
    %17 = vector.shape_cast %16 : vector<1x16x128xf32> to vector<16x128xf32>
    %18 = vector.shape_cast %15 : vector<16x128xf32> to vector<1x16x128xf32>
    tpu.vector_store %arg3[%c0_7, %c0_8, %c0_9], %18 {strides = array<i32>} : memref<1x16x128xf32, #tpu.memory_space<vmem>>, vector<1x16x128xf32>,
    return
  }
  func.func @transform_0(%arg0: i32) -> (i32, i32, i32) {
    %c0_i32 = arith.constant 0 : i32
    %c0_i32_0 = arith.constant 0 : i32
    %c0_i32_1 = arith.constant 0 : i32
    return %arg0, %c0_i32, %c0_i32_0 : i32, i32, i32
  }
  func.func @transform_1(%arg0: i32) -> (i32, i32) {
    %c0_i32 = arith.constant 0 : i32
    %c0_i32_0 = arith.constant 0 : i32
    %c0_i32_1 = arith.constant 0 : i32
    return %c0_i32, %c0_i32_0 : i32, i32
  }
  func.func @transform_2(%arg0: i32) -> (i32, i32, i32) {
    %c0_i32 = arith.constant 0 : i32
    %c0_i32_0 = arith.constant 0 : i32
    %c0_i32_1 = arith.constant 0 : i32
    return %arg0, %c0_i32, %c0_i32_0 : i32, i32, i32
  }
}

</mosaic_0001>

<llo_original>
// kernel: tpu_custom_call.1
$region0: #{tpu_custom_call.1}
  #allocation0 [shape = 'u32[]', space=smem, size = 0x4, offset = 0x4, fixed_abs, tag = 'smem constant byte address 0x4 - core index']
  #allocation1 [shape = 'u32[144,128]{1,0:T(1,128)}', space=vmem, size = 0x12000, scoped, tag = 'internal scratch']
  %s0 = inlined_call_operand.hbm [shape: bf16[2,8,128], index: 0, kind: input, shape index: {}]
  %s1 = inlined_call_operand.hbm [shape: bf16[16,128], index: 1, kind: input, shape index: {}]
  %s2 = inlined_call_operand.hbm [shape: f32[2,16,128], index: 2, kind: output, shape index: {}]
  %s3 = sld [smem:[#allocation0]]
  $region49: #{tpu_custom_call.1} parent=0
    _
  %s5 = ssub.s32 1, %s3
  %s6 = scalar_select 0, %s5, %s3
  $region1: #{tpu_custom_call.1} parent=0
    #allocation2 [shape = 'u8[4096]{0}', space=vmem, size = 0x1000, scoped, tag = 'input window, operand 0']
    #allocation3 [shape = 's32[2]{0}', space=sflag, size = 0x8, scoped, tag = 'scoped memory for tpu_custom_call.1']
    #allocation4 [shape = 's32[2]{0}', space=sflag, size = 0x8, scoped, tag = 'scoped memory for tpu_custom_call.1']
    #allocation5 [shape = 'u8[4096]{0}', space=vmem, size = 0x1000, scoped, tag = 'input window, operand 1, single buffered']
    #allocation6 [shape = 's32[1]{0}', space=sflag, size = 0x4, scoped, tag = 'scoped memory for tpu_custom_call.1']
    #allocation7 [shape = 'u8[16384]{0}', space=vmem, size = 0x4000, scoped, tag = 'output window, operand 0']
    %7 = vsyncpa [#allocation3], 0
    %s8 = scalar_lea.sflag [#allocation3], 1
    %9 = vsyncpa %s8, 0
    %10 = vsyncpa [#allocation6], 0
    %11 = vsyncpa [#allocation4], 0
    %s12 = scalar_lea.sflag [#allocation4], 1
    %13 = vsyncpa %s12, 0
    loop: start=0, step=1, limit=4
    $region2: #{tpu_custom_call.1} parent=1 // loop_pre_header
      _
    $region3: #{tpu_custom_call.1} parent=1 // loop_header
      %s15 = sphi 0, %s19
      %p16 = scmp.ge.s32.totalorder %s15, 4
      %s25 = sphi 0, %s27
      %s28 = sphi 0, %s25
      %s29 = sphi 0, %s28
      %s45 = sphi 0, %s29
      %s49 = sphi 0, %s49
      %s51 = sphi 0, %s49
      %s52 = sphi 0, %s51
      %s66 = sphi 0, %s52
      %s72 = sphi 0, %s74
      %s75 = sphi 0, %s72
      %s76 = sphi 0, %s75
      %s92 = sphi 0, %s76
    $region4: #{tpu_custom_call.1} parent=1 // loop_header_branch
      %18 = sbr.rel (%p16) target = $region8
    $region5: #{tpu_custom_call.1} parent=1 // loop_body
      %s20 = ssub.s32 %s15, 1
      %s21 = ssub.s32 %s15, 2
      %s22 = sadd.s32 %s15, 1
      %s23 = ssub.s32 %s15, %s22
      %p24 = scmp.eq.s32.totalorder %s23, 0
      %s26 = sadd.s32 %s25, 1
      %s27 = scalar_select %p24, %s25, %s26
      %p30 = pneg %p24
      %p31 = scmp.eq.s32.totalorder %s15, 1
      %p32 = por %p30, %p31
      %p33 = scmp.ne.s32.totalorder %s25, %s28
      %p34 = scmp.eq.s32.totalorder %s15, 0
      %p35 = por %p33, %p34
      %p36 = scmp.ne.s32.totalorder %s25, %s28
      %p37 = scmp.eq.s32.totalorder %s20, 1
      %p38 = por %p36, %p37
      %p39 = scmp.ne.s32.totalorder %s28, %s29
      %p40 = scmp.eq.s32.totalorder %s20, 0
      %p41 = por %p39, %p40
      %p42 = scmp.ne.s32.totalorder %s28, %s29
      %p43 = scmp.eq.s32.totalorder %s21, 1
      %p44 = por %p42, %p43
      %p46 = scmp.ne.s32.totalorder %s29, %s45
      %p47 = scmp.eq.s32.totalorder %s21, 0
      %p48 = por %p46, %p47
      %s50 = sadd.s32 %s49, 1
      %p53 = scmp.eq.s32.totalorder %s15, 1
      %p54 = scmp.ne.s32.totalorder %s49, %s51
      %p55 = scmp.eq.s32.totalorder %s15, 0
      %p56 = por %p54, %p55
      %p57 = scmp.ne.s32.totalorder %s49, %s51
      %p58 = scmp.eq.s32.totalorder %s20, 1
      %p59 = por %p57, %p58
      %p60 = scmp.ne.s32.totalorder %s51, %s52
      %p61 = scmp.eq.s32.totalorder %s20, 0
      %p62 = por %p60, %p61
      %p63 = scmp.ne.s32.totalorder %s51, %s52
      %p64 = scmp.eq.s32.totalorder %s21, 1
      %p65 = por %p63, %p64
      %p67 = scmp.ne.s32.totalorder %s52, %s66
      %p68 = scmp.eq.s32.totalorder %s21, 0
      %p69 = por %p67, %p68
      %s70 = ssub.s32 %s15, %s22
      %p71 = scmp.eq.s32.totalorder %s70, 0
      %s73 = sadd.s32 %s72, 1
      %s74 = scalar_select %p71, %s72, %s73
      %p77 = pneg %p71
      %p78 = scmp.eq.s32.totalorder %s15, 1
      %p79 = por %p77, %p78
      %p80 = scmp.ne.s32.totalorder %s72, %s75
      %p81 = scmp.eq.s32.totalorder %s15, 0
      %p82 = por %p80, %p81
      %p83 = scmp.ne.s32.totalorder %s72, %s75
      %p84 = scmp.eq.s32.totalorder %s20, 1
      %p85 = por %p83, %p84
      %p86 = scmp.ne.s32.totalorder %s75, %s76
      %p87 = scmp.eq.s32.totalorder %s20, 0
      %p88 = por %p86, %p87
      %p89 = scmp.ne.s32.totalorder %s75, %s76
      %p90 = scmp.eq.s32.totalorder %s21, 1
      %p91 = por %p89, %p90
      %p93 = scmp.ne.s32.totalorder %s76, %s92
      %p94 = scmp.eq.s32.totalorder %s21, 0
      %p95 = por %p93, %p94
      %p96 = scmp.le.s32.totalorder 1, %s15
      %p97 = scmp.lt.s32.totalorder %s15, 3
      %p98 = pnand %p96, %p97
      %p99 = pneg %p98
      // Predicated region
      $region9: #{tpu_custom_call.1} parent=5 // pred_check
        _
      $region10: #{tpu_custom_call.1} parent=5 // pred_check_branch
        %101 = sbr.rel (%p98) target = $region12
      $region11: #{tpu_custom_call.1} parent=5 // pred_region
        %s102 = ssub.s32 %s15, 1
        // Predicated region
        $region13: #{tpu_custom_call.1} parent=11 // pred_check
          %p103 = pneg %p62
        $region14: #{tpu_custom_call.1} parent=11 // pred_check_branch
          %105 = sbr.rel (%p103) target = $region16
        $region15: #{tpu_custom_call.1} parent=11 // pred_region
          %s107 = ssub.s32 128, 128
          %108 = vsyncadd [#allocation6], %s107
          %s109 = sshll.u32 [#allocation5], 4
          %s110 = int_to_ptr.vmem [resolvable:$true] %s109
          %115 = dma.hbm_to_vmem [thread:$0]  %s1, 128, %s110, [#allocation6], 64, 64, 4
        $region16: #{tpu_custom_call.1} parent=11 // pred_fallthru
          _
      $region12: #{tpu_custom_call.1} parent=5 // pred_fallthru
        _
      %p116 = scmp.lt.s32.totalorder %s15, 2
      // Predicated region
      $region17: #{tpu_custom_call.1} parent=5 // pred_check
        %p117 = pneg %p116
      $region18: #{tpu_custom_call.1} parent=5 // pred_check_branch
        %119 = sbr.rel (%p117) target = $region20
      $region19: #{tpu_custom_call.1} parent=5 // pred_region
        // Predicated region
        $region21: #{tpu_custom_call.1} parent=19 // pred_check
          %p120 = pneg %p35
        $region22: #{tpu_custom_call.1} parent=19 // pred_check_branch
          %122 = sbr.rel (%p120) target = $region24
        $region23: #{tpu_custom_call.1} parent=19 // pred_region
          %s123 = sand.u32 %s25, 1
          %s124 = scalar_lea.sflag [#allocation3], %s123
          %s125 = sand.u32 %s25, 1
          %s126 = smul.addr %s125, 4
          %s127 = scalar_lea.vmem [#allocation2], %s126
          %s129 = ssub.s32 64, 64
          %130 = vsyncadd %s124, %s129
          %s131 = smul.addr %s15, 64
          %s132 = scalar_lea.hbm %s0, %s131
          %s134 = sshll.u32 %s127, 4
          %s135 = int_to_ptr.vmem [resolvable:$true] %s134
          %137 = dma.hbm_to_vmem [thread:$0]  %s132, 64, %s135, %s124
        $region24: #{tpu_custom_call.1} parent=19 // pred_fallthru
          _
      $region20: #{tpu_custom_call.1} parent=5 // pred_fallthru
        _
      %p138 = scmp.le.s32.totalorder 1, %s15
      %p139 = scmp.lt.s32.totalorder %s15, 3
      %p140 = pnand %p138, %p139
      %p141 = pneg %p140
      // Predicated region
      $region25: #{tpu_custom_call.1} parent=5 // pred_check
        _
      $region26: #{tpu_custom_call.1} parent=5 // pred_check_branch
        %143 = sbr.rel (%p140) target = $region28
      $region27: #{tpu_custom_call.1} parent=5 // pred_region
        %s144 = ssub.s32 %s15, 1
        %s145 = sand.u32 %s28, 1
        %s146 = scalar_lea.sflag [#allocation3], %s145
        %s147 = sand.u32 %s28, 1
        %s148 = smul.addr %s147, 4
        %s149 = scalar_lea.vmem [#allocation2], %s148
        // Predicated region
        $region29: #{tpu_custom_call.1} parent=27 // pred_check
          %p150 = pneg %p41
        $region30: #{tpu_custom_call.1} parent=27 // pred_check_branch
          %152 = sbr.rel (%p150) target = $region32
        $region31: #{tpu_custom_call.1} parent=27 // pred_region
          %153 = dma.done %s146, 64
        $region32: #{tpu_custom_call.1} parent=27 // pred_fallthru
          _
        // Predicated region
        $region33: #{tpu_custom_call.1} parent=27 // pred_check
          %p154 = pneg %p62
        $region34: #{tpu_custom_call.1} parent=27 // pred_check_branch
          %156 = sbr.rel (%p154) target = $region36
        $region35: #{tpu_custom_call.1} parent=27 // pred_region
          %157 = dma.done [#allocation6], 128
        $region36: #{tpu_custom_call.1} parent=27 // pred_fallthru
          _
        %s158 = sand.u32 %s28, 1
        %s159 = scalar_lea.sflag [#allocation3], %s158
        %s160 = sand.u32 %s28, 1
        %s161 = smul.addr %s160, 4
        %s162 = scalar_lea.vmem [#allocation2], %s161
        %p163 = pneg %p41
        %p164 = pneg %p38
        %p165 = pneg %p62
        %p166 = pneg %p59
        %p167 = pneg %p88
        %p168 = pneg %p85
        %s169 = sand.u32 %s75, 1
        %s170 = scalar_lea.sflag [#allocation4], %s169
        %s171 = sand.u32 %s75, 1
        %s172 = smul.addr %s171, 16
        %s173 = scalar_lea.vmem [#allocation7], %s172
        %v175 = vld [vmem:[%s149] sm:$0xf]
        %v176 = vld [vmem:[#allocation5] sm:$0xf]
        %v177 = vld [vmem:[#allocation5 + $0x4] sm:$0xf]
        %v180 = vunpack.c.l.b16 %v176
        %v181 = vunpack.c.l.b16 %v177
        %v182 = vpack.c.b16 %v181, %v180
        %184 = vmatprep.subr.bf16.mxu0 0
        %185 = vmatpush1.bf16.xpose.msra.mxu0 %v175
        %186 = vmatprep.subr.bf16.mxu0 0
        %187 = vmatpush1.bf16.xpose.msra.mxu0 0
        %188 = vmatprep.subr.bf16.mxu0 0
        %189 = vmatpush1.bf16.xpose.msra.mxu0 0
        %190 = vmatprep.subr.bf16.mxu0 0
        %191 = vmatpush1.bf16.xpose.msra.mxu0 0
        %192 = vmatprep.subr.bf16.mxu0 0
        %193 = vmatpush1.bf16.xpose.msra.mxu0 0
        %194 = vmatprep.subr.bf16.mxu0 0
        %195 = vmatpush1.bf16.xpose.msra.mxu0 0
        %196 = vmatprep.subr.bf16.mxu0 0
        %197 = vmatpush1.bf16.xpose.msra.mxu0 0
        %198 = vmatprep.subr.bf16.mxu0 0
        %199 = vmatpush1.bf16.xpose.msra.mxu0 0
        %200 = vmatprep.subr.bf16.mxu0 0
        %201 = vmatpush1.bf16.xpose.msra.mxu0 0
        %202 = vmatprep.subr.bf16.mxu0 0
        %203 = vmatpush1.bf16.xpose.msra.mxu0 0
        %204 = vmatprep.subr.bf16.mxu0 0
        %205 = vmatpush1.bf16.xpose.msra.mxu0 0
        %206 = vmatprep.subr.bf16.mxu0 0
        %207 = vmatpush1.bf16.xpose.msra.mxu0 0
        %208 = vmatprep.subr.bf16.mxu0 0
        %209 = vmatpush1.bf16.xpose.msra.mxu0 0
        %210 = vmatprep.subr.bf16.mxu0 0
        %211 = vmatpush1.bf16.xpose.msra.mxu0 0
        %212 = vmatprep.subr.bf16.mxu0 0
        %213 = vmatpush1.bf16.xpose.msra.mxu0 0
        %214 = vmatprep.subr.bf16.mxu0 0
        %215 = vmatpush1.bf16.xpose.msra.mxu0 0
        %216 = vmatprep.mubr.bf16.mxu0 0
        %217 = vmatmul.mubr.bf16.gmra.mrb[0].mxu0 %v182
        %v218 = vpop.f32.mrb[0].mxu0
        %v219 = vadd.f32 0.0, %v218
        %v220 = vpop.f32.mrb[0].mxu0
        %v221 = vpop.f32.mrb[0].mxu0
        %v222 = vadd.f32 0.0, %v221
        %v223 = vpop.f32.mrb[0].mxu0
        %224 = vdwg.mxu0
        %vm225 = vcmask 64512
        %v226 = vsel %vm225, %v219, -inf
        %227 = vmax.xlane.f32.xlu0 %v226
        %v228 = vpop.xlane.xlu0 %227
        %v229 = vsel %vm225, %v222, -inf
        %230 = vmax.xlane.f32.xlu0 %v229
        %v231 = vpop.xlane.xlu0 %230
        %v232 = vsub.f32 %v219, %v228
        %v233 = vsub.f32 %v222, %v231
        %v234 = vmul.f32 %v232, 1.442695
        %v235 = vpow.pop %v234
        %v236 = vmul.f32 %v233, 1.442695
        %v237 = vpow.pop %v236
        %v238 = vsel %vm225, %v235, 0.0
        %239 = vadd.xlane.f32.xlu0 %v238
        %v240 = vpop.xlane.xlu0 %239
        %v241 = vsel %vm225, %v237, 0.0
        %242 = vadd.xlane.f32.xlu0 %v241
        %v243 = vpop.xlane.xlu0 %242
        %v244 = vpack.c.bf16 %v237, %v235
        %v246 = vsel %vm225, %v244, 0
        %vm248 = vcmask 1043456
        %v250 = vsel %vm248, %v175, 0
        %252 = vmatprep.subr.bf16.mxu0 0
        %253 = vmatpush1.bf16.msra.mxu0 %v250
        %254 = vmatprep.subr.bf16.mxu0 0
        %255 = vmatpush1.bf16.msra.mxu0 0
        %256 = vmatprep.subr.bf16.mxu0 0
        %257 = vmatpush1.bf16.msra.mxu0 0
        %258 = vmatprep.subr.bf16.mxu0 0
        %259 = vmatpush1.bf16.msra.mxu0 0
        %260 = vmatprep.subr.bf16.mxu0 0
        %261 = vmatpush1.bf16.msra.mxu0 0
        %262 = vmatprep.subr.bf16.mxu0 0
        %263 = vmatpush1.bf16.msra.mxu0 0
        %264 = vmatprep.subr.bf16.mxu0 0
        %265 = vmatpush1.bf16.msra.mxu0 0
        %266 = vmatprep.subr.bf16.mxu0 0
        %267 = vmatpush1.bf16.msra.mxu0 0
        %268 = vmatprep.subr.bf16.mxu0 0
        %269 = vmatpush1.bf16.msra.mxu0 0
        %270 = vmatprep.subr.bf16.mxu0 0
        %271 = vmatpush1.bf16.msra.mxu0 0
        %272 = vmatprep.subr.bf16.mxu0 0
        %273 = vmatpush1.bf16.msra.mxu0 0
        %274 = vmatprep.subr.bf16.mxu0 0
        %275 = vmatpush1.bf16.msra.mxu0 0
        %276 = vmatprep.subr.bf16.mxu0 0
        %277 = vmatpush1.bf16.msra.mxu0 0
        %278 = vmatprep.subr.bf16.mxu0 0
        %279 = vmatpush1.bf16.msra.mxu0 0
        %280 = vmatprep.subr.bf16.mxu0 0
        %281 = vmatpush1.bf16.msra.mxu0 0
        %282 = vmatprep.subr.bf16.mxu0 0
        %283 = vmatpush1.bf16.msra.mxu0 0
        %284 = vmatprep.mubr.bf16.mxu0 0
        %285 = vmatmul.mubr.bf16.gmra.mrb[0].mxu0 %v246
        %v286 = vpop.f32.mrb[0].mxu0
        %v287 = vadd.f32 0.0, %v286
        %v288 = vpop.f32.mrb[0].mxu0
        %v289 = vpop.f32.mrb[0].mxu0
        %v290 = vadd.f32 0.0, %v289
        %v291 = vpop.f32.mrb[0].mxu0
        %292 = vdwg.mxu0
        %v293 = vrcp.pop %v240
        %v294 = vrcp.pop %v243
        %v295 = vmul.f32 %v287, %v293
        %v296 = vmul.f32 %v290, %v294
        %297 = vst [vmem:[%s173] sm:$0xff] %v295
        %298 = vst [vmem:[%s173 + $0x8] sm:$0xff] %v296
        %s299 = sand.u32 %s75, 1
        %s300 = scalar_lea.sflag [#allocation4], %s299
        %s301 = sand.u32 %s75, 1
        %s302 = smul.addr %s301, 16
        %s303 = scalar_lea.vmem [#allocation7], %s302
        // Predicated region
        $region37: #{tpu_custom_call.1} parent=27 // pred_check
          %p304 = pneg %p85
        $region38: #{tpu_custom_call.1} parent=27 // pred_check_branch
          %306 = sbr.rel (%p304) target = $region40
        $region39: #{tpu_custom_call.1} parent=27 // pred_region
          %s308 = ssub.s32 256, 256
          %309 = vsyncadd %s300, %s308
          %s310 = smul.addr %s20, 2
          %s311 = smul.addr %s310, 128
          %s312 = scalar_lea.hbm %s2, %s311
          %s313 = sshll.u32 %s303, 4
          %s314 = int_to_ptr.vmem [resolvable:$true] %s313
          %319 = dma.vmem_to_hbm [thread:$0]  %s314, 256, %s312, %s300, 128, 128, 8
        $region40: #{tpu_custom_call.1} parent=27 // pred_fallthru
          _
      $region28: #{tpu_custom_call.1} parent=5 // pred_fallthru
        _
      %p320 = scmp.le.s32.totalorder 2, %s15
      // Predicated region
      $region41: #{tpu_custom_call.1} parent=5 // pred_check
        %p321 = pneg %p320
      $region42: #{tpu_custom_call.1} parent=5 // pred_check_branch
        %323 = sbr.rel (%p321) target = $region44
      $region43: #{tpu_custom_call.1} parent=5 // pred_region
        %s324 = ssub.s32 %s15, 2
        // Predicated region
        $region45: #{tpu_custom_call.1} parent=43 // pred_check
          %p325 = pneg %p91
        $region46: #{tpu_custom_call.1} parent=43 // pred_check_branch
          %327 = sbr.rel (%p325) target = $region48
        $region47: #{tpu_custom_call.1} parent=43 // pred_region
          %s328 = sand.u32 %s76, 1
          %s329 = scalar_lea.sflag [#allocation4], %s328
          %s330 = sand.u32 %s76, 1
          %s331 = smul.addr %s330, 16
          %s332 = scalar_lea.vmem [#allocation7], %s331
          %333 = dma.done %s329, 256
        $region48: #{tpu_custom_call.1} parent=43 // pred_fallthru
          _
      $region44: #{tpu_custom_call.1} parent=5 // pred_fallthru
        _
    $region6: #{tpu_custom_call.1} parent=1 // loop_footer
      %s19 = sadd.s32 1, %s15
    $region7: #{tpu_custom_call.1} parent=1 // loop_footer_branch
      %14 = sbr.rel target = $region3
    $region8: #{tpu_custom_call.1} parent=1 // loop_exit
      _
    %334 = vsyncpa [#allocation3], 1
    %s335 = scalar_lea.sflag [#allocation3], 1
    %336 = vsyncpa %s335, 1
    %337 = vsyncpa [#allocation6], 1
    %338 = vsyncpa [#allocation4], 1
    %s339 = scalar_lea.sflag [#allocation4], 1
    %340 = vsyncpa %s339, 1

</llo_original>
